<compile_context>
chip_gen: v6e
topology: v6e:2x2x1
jax: 0.10.0
libtpu: 0.0.40
codegen_flags: <defaults>
</compile_context>

<pallas_src>
from typing import Any, NamedTuple, Optional

import jax
import jax.numpy as jnp
from jax.experimental import pallas as pl
from jax.experimental.pallas import tpu as pltpu


# ---------------------------------------------------------------------------
# Kernels
# ---------------------------------------------------------------------------
def _update_kernel_joint(c_ref, w1_ref, b1_ref, w2_ref, b2_ref, o_ref):
    # Layer 1 on the (wrapper-)concatenated features; accumulate in f32.
    h = jnp.dot(c_ref[...], w1_ref[...], preferred_element_type=jnp.float32)
    h = jnp.maximum(h + b1_ref[...], 0.0)                       # bias + ReLU in f32
    y = jnp.dot(h.astype(w2_ref.dtype), w2_ref[...],
                preferred_element_type=jnp.float32) + b2_ref[...]
    o_ref[...] = y.astype(o_ref.dtype)


def _update_kernel_split(x_ref, a_ref, w1x_ref, w1a_ref, b1_ref, w2_ref, b2_ref,
                         o_ref):
    # concat([x, agg]) @ W1 == x @ W1[:Dx] + agg @ W1[Dx:]  (exact).
    h = (jnp.dot(x_ref[...], w1x_ref[...], preferred_element_type=jnp.float32)
         + jnp.dot(a_ref[...], w1a_ref[...], preferred_element_type=jnp.float32))
    h = jnp.maximum(h + b1_ref[...], 0.0)
    y = jnp.dot(h.astype(w2_ref.dtype), w2_ref[...],
                preferred_element_type=jnp.float32) + b2_ref[...]
    o_ref[...] = y.astype(o_ref.dtype)


# ---------------------------------------------------------------------------
# Helpers
# ---------------------------------------------------------------------------
def _cdiv(a, b):
    return -(-a // b)


def _round_up(x, m):
    return _cdiv(x, m) * m


def _pad2(a, rows, cols):
    r, c = a.shape
    if r == rows and c == cols:
        return a
    return jnp.pad(a, ((0, rows - r), (0, cols - c)))


def _vmem_capacity_bytes():
    """Best-effort physical VMEM query; conservative (v7x) fallback."""
    get_info = getattr(pltpu, "get_tpu_info", None)
    if get_info is not None:
        try:
            cap = getattr(get_info(), "vmem_capacity_bytes", None)
            if cap:
                return int(cap)
        except Exception:  # hardware query is best-effort only
            pass
    return 64 << 20


def _supports_buffered():
    """Trace-free probe: does this JAX accept pipeline_mode=pl.Buffered(k)?"""
    buffered = getattr(pl, "Buffered", None)
    if buffered is None:
        return False
    try:
        pl.BlockSpec((8, 128), lambda i: (0, 0), pipeline_mode=buffered(1))
    except (TypeError, ValueError):
        return False
    return True


def _const_spec(shape, single_buffer):
    idx = lambda i: (0,) * len(shape)
    if single_buffer:
        # Constant index_map -> never re-fetched; one VMEM buffer is enough.
        return pl.BlockSpec(shape, idx, pipeline_mode=pl.Buffered(1))
    return pl.BlockSpec(shape, idx)


# ---------------------------------------------------------------------------
# Parameter preparation (hoist padding / casting out of the per-call path)
# ---------------------------------------------------------------------------
class UpdateParams(NamedTuple):
    split: bool
    dx: int
    da: int
    output_dim: int
    dx_p: int                    # joint: padded combined width; split: padded Dx
    da_p: int                    # split only (0 for the joint path)
    out_p: int
    compute_dtype: Any
    w1x: jax.Array               # joint: full padded W1; split: padded W1[:Dx]
    w1a: Optional[jax.Array]     # split: padded W1[Dx:]; joint: None
    b1: jax.Array                # f32, (1, out_p)
    w2: jax.Array                # compute dtype, (out_p, out_p)
    b2: jax.Array                # f32, (1, out_p)


def prepare_params(w1, b1, w2, b2, dx, da, *, compute_dtype=jnp.bfloat16):
    """Pad/cast weights once (call outside the hot path)."""
    feature_dim, output_dim = w1.shape
    assert dx + da == feature_dim
    assert w2.shape == (output_dim, output_dim)
    cdt = compute_dtype
    f32 = jnp.float32

    out_p = _round_up(output_dim, 128)
    b1p = _pad2(b1.reshape(1, -1).astype(f32), 1, out_p)
    b2p = _pad2(b2.reshape(1, -1).astype(f32), 1, out_p)
    w2p = _pad2(w2.astype(cdt), out_p, out_p)

    # Split layer-1 only when both halves are already lane-aligned; otherwise
    # joint-pad the combined width (avoids 2x K inflation for small Dx/Da).
    split = dx > 0 and da > 0 and dx % 128 == 0 and da % 128 == 0
    if split:
        dx_p, da_p = dx, da
        w1x = _pad2(w1[:dx, :].astype(cdt), dx_p, out_p)
        w1a = _pad2(w1[dx:, :].astype(cdt), da_p, out_p)
    else:
        dx_p = _round_up(feature_dim, 128)
        da_p = 0
        w1x = _pad2(w1.astype(cdt), dx_p, out_p)
        w1a = None

    return UpdateParams(split, dx, da, output_dim, dx_p, da_p, out_p, cdt,
                        w1x, w1a, b1p, w2p, b2p)


# ---------------------------------------------------------------------------
# Forward pass
# ---------------------------------------------------------------------------
def update_function_prepared(x, aggregated_features, params: UpdateParams, *,
                             tile_rows=None, input_buffering=2):
    n, dx = x.shape
    n2, da = aggregated_features.shape
    assert n2 == n and dx == params.dx and da == params.da

    cdt = params.compute_dtype
    out_p = params.out_p
    elt_c = jnp.dtype(cdt).itemsize
    sub = 16 if elt_c == 2 else 8          # sublane packing (bf16 vs f32)
    f32 = jnp.float32

    feat_dims = (params.dx_p, params.da_p) if params.split else (params.dx_p,)
    k_l1 = sum(feat_dims)

    # Adaptive row tile: target 512 rows, but bound N-padding waste.
    target_tm = 512 if tile_rows is None else max(int(tile_rows), sub)
    num_tiles = max(1, _cdiv(n, target_tm))
    tm = _round_up(_cdiv(n, num_tiles), sub)

    # Generation-aware VMEM budget, incl. the f32 h intermediate / temporaries.
    vmem_budget = int(_vmem_capacity_bytes() * 0.85)
    single_w = _supports_buffered()
    w_bufs = 1 if single_w else 2
    in_bufs = max(2, int(input_buffering))

    def _needed(tm_):
        act_in = in_bufs * tm_ * k_l1 * elt_c           # pipelined input tiles
        act_out = 2 * tm_ * out_p * 4                   # pipelined output tiles
        scratch = 2 * tm_ * out_p * 4                   # h + dot temporaries (f32)
        w_bytes = w_bufs * (k_l1 * out_p + out_p * out_p) * elt_c
        b_bytes = w_bufs * 2 * out_p * 4
        return act_in + act_out + scratch + w_bytes + b_bytes + (2 << 20)

    while tm > sub and _needed(tm) > vmem_budget:
        tm = _round_up(max(tm // 2, sub), sub)

    n_p = _round_up(n, tm)
    grid = (n_p // tm,)

    # Activation inputs (cast + pad; concat once in the wrapper for the joint path).
    def _act_spec(shape):
        idx = lambda i: (i, 0)
        if input_buffering != 2 and single_w:
            return pl.BlockSpec(shape, idx,
                                pipeline_mode=pl.Buffered(int(input_buffering)))
        return pl.BlockSpec(shape, idx)

    if params.split:
        kernel = _update_kernel_split
        act_args = (_pad2(x.astype(cdt), n_p, params.dx_p),
                    _pad2(aggregated_features.astype(cdt), n_p, params.da_p))
        act_specs = [_act_spec((tm, params.dx_p)), _act_spec((tm, params.da_p))]
        w_args = (params.w1x, params.w1a, params.b1, params.w2, params.b2)
        w_shapes = [(params.dx_p, out_p), (params.da_p, out_p), (1, out_p),
                    (out_p, out_p), (1, out_p)]
    else:
        kernel = _update_kernel_joint
        combined = jnp.concatenate(
            [x.astype(cdt), aggregated_features.astype(cdt)], axis=-1)
        act_args = (_pad2(combined, n_p, params.dx_p),)
        act_specs = [_act_spec((tm, params.dx_p))]
        w_args = (params.w1x, params.b1, params.w2, params.b2)
        w_shapes = [(params.dx_p, out_p), (1, out_p), (out_p, out_p), (1, out_p)]

    flops = 2 * n_p * k_l1 * out_p + 2 * n_p * out_p * out_p
    bytes_accessed = (n_p * k_l1 * elt_c + n_p * out_p * 4
                      + (k_l1 * out_p + out_p * out_p) * elt_c + 2 * out_p * 4)
    cost = pl.CostEstimate(flops=int(flops), transcendentals=0,
                           bytes_accessed=int(bytes_accessed))
    vmem_limit = int(min(max(_needed(tm), 32 << 20), vmem_budget))

    def _run(single_buffer_weights):
        w_specs = [_const_spec(s, single_buffer_weights) for s in w_shapes]
        call = pl.pallas_call(
            kernel,
            out_shape=jax.ShapeDtypeStruct((n_p, out_p), f32),
            grid_spec=pltpu.PrefetchScalarGridSpec(
                num_scalar_prefetch=0,
                grid=grid,
                in_specs=act_specs + w_specs,
                out_specs=pl.BlockSpec((tm, out_p), lambda i: (i, 0)),
            ),
            compiler_params=pltpu.CompilerParams(
                dimension_semantics=("parallel",),
                vmem_limit_bytes=vmem_limit,
            ),
            cost_estimate=cost,
        )
        return call(*act_args, *w_args)

    if single_w:
        try:
            out_padded = _run(True)
        except pltpu.LoweringException:
            # Narrow fallback: only a pl.Buffered(1)-related lowering rejection
            # is retried with default double-buffered weights.
            out_padded = _run(False)
    else:
        out_padded = _run(False)

    return out_padded[:n, :params.output_dim].astype(x.dtype)


def update_function(x, aggregated_features, w1, b1, w2, b2, *,
                    tile_rows=None, compute_dtype=jnp.bfloat16,
                    input_buffering=2):
    """Convenience wrapper. For repeated calls, hoist prepare_params()."""
    params = prepare_params(w1, b1, w2, b2, x.shape[-1],
                            aggregated_features.shape[-1],
                            compute_dtype=compute_dtype)
    return update_function_prepared(x, aggregated_features, params,
                                    tile_rows=tile_rows,
                                    input_buffering=input_buffering)


# ---------------------------------------------------------------------------
# Reference + self-test
# ---------------------------------------------------------------------------
def _reference(x, agg, w1, b1, w2, b2):
    combined = jnp.concatenate([x, agg], axis=-1)
    h = jnp.maximum(combined @ w1 + b1, 0.0)
    return h @ w2 + b2


if __name__ == "__main__":
    N, Dx, Da, OUT = 10, 16, 16, 32
    feature_dim = Dx + Da

    key = jax.random.PRNGKey(0)
    kx, ka, kw1, kb1, kw2, kb2 = jax.random.split(key, 6)

    x = jax.random.normal(kx, (N, Dx), dtype=jnp.float32)
    agg = jax.random.normal(ka, (N, Da), dtype=jnp.float32)

    # nn.Linear parameters, stored transposed ([in, out]).
    w1 = jax.random.normal(kw1, (feature_dim, OUT), dtype=jnp.float32) * 0.1
    b1 = jax.random.normal(kb1, (OUT,), dtype=jnp.float32) * 0.1
    w2 = jax.random.normal(kw2, (OUT, OUT), dtype=jnp.float32) * 0.1
    b2 = jax.random.normal(kb2, (OUT,), dtype=jnp.float32) * 0.1

    ref = _reference(x, agg, w1, b1, w2, b2)

    # Strict-f32 parity path.
    out_f32 = jax.block_until_ready(
        update_function(x, agg, w1, b1, w2, b2, compute_dtype=jnp.float32))
    assert out_f32.shape == (N, OUT)
    assert jnp.allclose(out_f32, ref, atol=1e-5, rtol=1e-5)

    # Default bf16-MXU path (f32 accumulate / bias / ReLU): looser tolerance.
    out_bf16 = jax.block_until_ready(update_function(x, agg, w1, b1, w2, b2))
    assert out_bf16.shape == (N, OUT)
    assert jnp.allclose(out_bf16, ref, atol=5e-2, rtol=5e-2)

    # Multi-step grid + hoisted weight preparation (3 grid steps here).
    N2 = 70
    x2 = jax.random.normal(kx, (N2, Dx), dtype=jnp.float32)
    agg2 = jax.random.normal(ka, (N2, Da), dtype=jnp.float32)
    params = prepare_params(w1, b1, w2, b2, Dx, Da, compute_dtype=jnp.bfloat16)
    out2 = jax.block_until_ready(
        update_function_prepared(x2, agg2, params, tile_rows=32))
    ref2 = _reference(x2, agg2, w1, b1, w2, b2)
    assert out2.shape == (N2, OUT)
    assert jnp.allclose(out2, ref2, atol=5e-2, rtol=5e-2)

    print("KERNEL_OK")
</pallas_src>

<mosaic_0001>
module attributes {stable_mosaic.version = 11 : i64} {
  func.func @_update_kernel_joint(%arg0: i32, %arg1: memref<16x128xf32, #tpu.memory_space<vmem>>, %arg2: memref<128x128xf32, #tpu.memory_space<vmem>>, %arg3: memref<1x128xf32, #tpu.memory_space<vmem>>, %arg4: memref<128x128xf32, #tpu.memory_space<vmem>>, %arg5: memref<1x128xf32, #tpu.memory_space<vmem>>, %arg6: memref<16x128xf32, #tpu.memory_space<vmem>>) attributes {dimension_semantics = [#tpu.dimension_semantics<parallel>], iteration_bounds = array<i64: 1>, scalar_prefetch = 0 : i64, scratch_operands = 0 : i64, tpu.core_type = #tpu.core_type<tc>, window_params = [{transform_indices = @transform_0, window_bounds = array<i64: 16, 128>}, {pipeline_mode = #tpu.pipeline_mode<synchronous>, transform_indices = @transform_1, window_bounds = array<i64: 128, 128>}, {pipeline_mode = #tpu.pipeline_mode<synchronous>, transform_indices = @transform_2, window_bounds = array<i64: 1, 128>}, {pipeline_mode = #tpu.pipeline_mode<synchronous>, transform_indices = @transform_3, window_bounds = array<i64: 128, 128>}, {pipeline_mode = #tpu.pipeline_mode<synchronous>, transform_indices = @transform_4, window_bounds = array<i64: 1, 128>}, {transform_indices = @transform_5, window_bounds = array<i64: 16, 128>}]} {
    %c0 = arith.constant 0 : index
    %c0_0 = arith.constant 0 : index
    %0 = vector.load %arg1[%c0, %c0_0] : memref<16x128xf32, #tpu.memory_space<vmem>>, vector<16x128xf32>
    %c0_1 = arith.constant 0 : index
    %c0_2 = arith.constant 0 : index
    %1 = vector.load %arg2[%c0_1, %c0_2] : memref<128x128xf32, #tpu.memory_space<vmem>>, vector<128x128xf32>
    %cst = arith.constant dense<0.000000e+00> : vector<16x128xf32>
    %2 = tpu.matmul %0, %1, %cst {dimension_numbers = #tpu.dot_dimension_numbers<[1], [0], [0], [1], [0, 0, 1, 1], [], []>} : vector<16x128xf32>, vector<128x128xf32>, vector<16x128xf32> -> vector<16x128xf32>
    %c0_3 = arith.constant 0 : index
    %c0_4 = arith.constant 0 : index
    %3 = vector.load %arg3[%c0_3, %c0_4] : memref<1x128xf32, #tpu.memory_space<vmem>>, vector<1x128xf32>
    %4 = vector.broadcast %3 : vector<1x128xf32> to vector<16x128xf32>
    %5 = arith.addf %2, %4 : vector<16x128xf32>
    %cst_5 = arith.constant 0.000000e+00 : f32
    %6 = vector.broadcast %cst_5 : f32 to vector<16x128xf32>
    %7 = arith.maximumf %5, %6 : vector<16x128xf32>
    %c0_6 = arith.constant 0 : index
    %c0_7 = arith.constant 0 : index
    %8 = vector.load %arg4[%c0_6, %c0_7] : memref<128x128xf32, #tpu.memory_space<vmem>>, vector<128x128xf32>
    %cst_8 = arith.constant dense<0.000000e+00> : vector<16x128xf32>
    %9 = tpu.matmul %7, %8, %cst_8 {dimension_numbers = #tpu.dot_dimension_numbers<[1], [0], [0], [1], [0, 0, 1, 1], [], []>} : vector<16x128xf32>, vector<128x128xf32>, vector<16x128xf32> -> vector<16x128xf32>
    %c0_9 = arith.constant 0 : index
    %c0_10 = arith.constant 0 : index
    %10 = vector.load %arg5[%c0_9, %c0_10] : memref<1x128xf32, #tpu.memory_space<vmem>>, vector<1x128xf32>
    %11 = vector.broadcast %10 : vector<1x128xf32> to vector<16x128xf32>
    %12 = arith.addf %9, %11 : vector<16x128xf32>
    %c0_11 = arith.constant 0 : index
    %c0_12 = arith.constant 0 : index
    %13 = vector.load %arg6[%c0_11, %c0_12] : memref<16x128xf32, #tpu.memory_space<vmem>>, vector<16x128xf32>
    tpu.vector_store %arg6[%c0_11, %c0_12], %12 {strides = array<i32>} : memref<16x128xf32, #tpu.memory_space<vmem>>, vector<16x128xf32>,
    return
  }
  func.func @transform_0(%arg0: i32) -> (i32, i32) {
    %c0_i32 = arith.constant 0 : i32
    %c0_i32_0 = arith.constant 0 : i32
    return %arg0, %c0_i32 : i32, i32
  }
  func.func @transform_1(%arg0: i32) -> (i32, i32) {
    %c0_i32 = arith.constant 0 : i32
    %c0_i32_0 = arith.constant 0 : i32
    %c0_i32_1 = arith.constant 0 : i32
    return %c0_i32, %c0_i32_0 : i32, i32
  }
  func.func @transform_2(%arg0: i32) -> (i32, i32) {
    %c0_i32 = arith.constant 0 : i32
    %c0_i32_0 = arith.constant 0 : i32
    %c0_i32_1 = arith.constant 0 : i32
    return %c0_i32, %c0_i32_0 : i32, i32
  }
  func.func @transform_3(%arg0: i32) -> (i32, i32) {
    %c0_i32 = arith.constant 0 : i32
    %c0_i32_0 = arith.constant 0 : i32
    %c0_i32_1 = arith.constant 0 : i32
    return %c0_i32, %c0_i32_0 : i32, i32
  }
  func.func @transform_4(%arg0: i32) -> (i32, i32) {
    %c0_i32 = arith.constant 0 : i32
    %c0_i32_0 = arith.constant 0 : i32
    %c0_i32_1 = arith.constant 0 : i32
    return %c0_i32, %c0_i32_0 : i32, i32
  }
  func.func @transform_5(%arg0: i32) -> (i32, i32) {
    %c0_i32 = arith.constant 0 : i32
    %c0_i32_0 = arith.constant 0 : i32
    return %arg0, %c0_i32 : i32, i32
  }
}

</mosaic_0001>

<llo_original>
// kernel: tpu_custom_call.1
$region0: #{tpu_custom_call.1}
  #allocation0 [shape = 'u32[]', space=smem, size = 0x4, offset = 0x4, fixed_abs, tag = 'smem constant byte address 0x4 - core index']
  #allocation1 [shape = 'u32[144,128]{1,0:T(1,128)}', space=vmem, size = 0x12000, scoped, tag = 'internal scratch']
  %s0 = inlined_call_operand.hbm [shape: f32[16,128], index: 0, kind: input, shape index: {}]
  %s1 = inlined_call_operand.hbm [shape: f32[128,128], index: 1, kind: input, shape index: {}]
  %s2 = inlined_call_operand.vmem [shape: f32[1,128], index: 2, kind: input, shape index: {}]
  %s3 = inlined_call_operand.hbm [shape: f32[128,128], index: 3, kind: input, shape index: {}]
  %s4 = inlined_call_operand.vmem [shape: f32[1,128], index: 4, kind: input, shape index: {}]
  %s5 = inlined_call_operand.hbm [shape: f32[16,128], index: 5, kind: output, shape index: {}]
  %s6 = sld [smem:[#allocation0]]
  $region42: #{tpu_custom_call.1} parent=0
    _
  %s8 = ssub.s32 1, %s6
  %s9 = scalar_select 0, %s8, %s6
  $region1: #{tpu_custom_call.1} parent=0
    #allocation2 [shape = 'u8[8192]{0}', space=vmem, size = 0x2000, scoped, tag = 'input window, operand 0, single buffered']
    #allocation3 [shape = 's32[1]{0}', space=sflag, size = 0x4, scoped, tag = 'scoped memory for tpu_custom_call.1']
    #allocation4 [shape = 's32[1]{0}', space=sflag, size = 0x4, scoped, tag = 'scoped memory for tpu_custom_call.1']
    #allocation5 [shape = 'u8[65536]{0}', space=vmem, size = 0x10000, scoped, tag = 'input window, operand 1, single buffered']
    #allocation6 [shape = 's32[1]{0}', space=sflag, size = 0x4, scoped, tag = 'scoped memory for tpu_custom_call.1']
    #allocation7 [shape = 'u8[65536]{0}', space=vmem, size = 0x10000, scoped, tag = 'input window, operand 3, single buffered']
    #allocation8 [shape = 'u8[8192]{0}', space=vmem, size = 0x2000, scoped, tag = 'output window, operand 0, single buffered']
    %10 = vsyncpa [#allocation3], 0
    %11 = vsyncpa [#allocation6], 0
    %12 = vsyncpa [#allocation4], 0
    // Predicated region
    $region2: #{tpu_custom_call.1} parent=1 // pred_check
      _
    $region3: #{tpu_custom_call.1} parent=1 // pred_check_branch
      %14 = sbr.rel (0) target = $region5
    $region4: #{tpu_custom_call.1} parent=1 // pred_region
      %s16 = ssub.s32 256, 256
      %17 = vsyncadd [#allocation3], %s16
      %s18 = sshll.u32 [#allocation2], 4
      %s19 = int_to_ptr.vmem [resolvable:$true] %s18
      %24 = dma.hbm_to_vmem [thread:$0]  %s0, 256, %s19, [#allocation3], 128, 128, 8
    $region5: #{tpu_custom_call.1} parent=1 // pred_fallthru
      _
    // Predicated region
    $region6: #{tpu_custom_call.1} parent=1 // pred_check
      _
    $region7: #{tpu_custom_call.1} parent=1 // pred_check_branch
      %26 = sbr.rel (0) target = $region9
    $region8: #{tpu_custom_call.1} parent=1 // pred_region
      %s28 = ssub.s32 2048, 2048
      %29 = vsyncadd [#allocation6], %s28
      %s30 = sshll.u32 [#allocation5], 4
      %s31 = int_to_ptr.vmem [resolvable:$true] %s30
      %36 = dma.hbm_to_vmem [thread:$0]  %s1, 2048, %s31, [#allocation6], 128, 128, 8
    $region9: #{tpu_custom_call.1} parent=1 // pred_fallthru
      _
    // Predicated region
    $region10: #{tpu_custom_call.1} parent=1 // pred_check
      _
    $region11: #{tpu_custom_call.1} parent=1 // pred_check_branch
      %38 = sbr.rel (0) target = $region13
    $region12: #{tpu_custom_call.1} parent=1 // pred_region
      _
    $region13: #{tpu_custom_call.1} parent=1 // pred_fallthru
      _
    // Predicated region
    $region14: #{tpu_custom_call.1} parent=1 // pred_check
      _
    $region15: #{tpu_custom_call.1} parent=1 // pred_check_branch
      %40 = sbr.rel (0) target = $region17
    $region16: #{tpu_custom_call.1} parent=1 // pred_region
      %s42 = ssub.s32 2048, 2048
      %43 = vsyncadd [#allocation6], %s42
      %s44 = sshll.u32 [#allocation7], 4
      %s45 = int_to_ptr.vmem [resolvable:$true] %s44
      %50 = dma.hbm_to_vmem [thread:$0]  %s3, 2048, %s45, [#allocation6], 128, 128, 8
    $region17: #{tpu_custom_call.1} parent=1 // pred_fallthru
      _
    // Predicated region
    $region18: #{tpu_custom_call.1} parent=1 // pred_check
      _
    $region19: #{tpu_custom_call.1} parent=1 // pred_check_branch
      %52 = sbr.rel (0) target = $region21
    $region20: #{tpu_custom_call.1} parent=1 // pred_region
      _
    $region21: #{tpu_custom_call.1} parent=1 // pred_fallthru
      _
    // Predicated region
    $region22: #{tpu_custom_call.1} parent=1 // pred_check
      _
    $region23: #{tpu_custom_call.1} parent=1 // pred_check_branch
      %54 = sbr.rel (0) target = $region25
    $region24: #{tpu_custom_call.1} parent=1 // pred_region
      %55 = dma.done [#allocation3], 256
    $region25: #{tpu_custom_call.1} parent=1 // pred_fallthru
      _
    // Predicated region
    $region26: #{tpu_custom_call.1} parent=1 // pred_check
      _
    $region27: #{tpu_custom_call.1} parent=1 // pred_check_branch
      %57 = sbr.rel (0) target = $region29
    $region28: #{tpu_custom_call.1} parent=1 // pred_region
      %58 = dma.done [#allocation6], 2048
    $region29: #{tpu_custom_call.1} parent=1 // pred_fallthru
      _
    // Predicated region
    $region30: #{tpu_custom_call.1} parent=1 // pred_check
      _
    $region31: #{tpu_custom_call.1} parent=1 // pred_check_branch
      %60 = sbr.rel (0) target = $region33
    $region32: #{tpu_custom_call.1} parent=1 // pred_region
      %61 = dma.done [#allocation6], 2048
    $region33: #{tpu_custom_call.1} parent=1 // pred_fallthru
      _
    %v62 = vld [vmem:[#allocation2] sm:$0xff]
    %v63 = vld [vmem:[#allocation2 + $0x8] sm:$0xff]
    %v64 = vld [vmem:[#allocation5] sm:$0xff]
    %v65 = vld [vmem:[#allocation5 + $0x8] sm:$0xff]
    %v66 = vld [vmem:[#allocation5 + $0x10] sm:$0xff]
    %v67 = vld [vmem:[#allocation5 + $0x18] sm:$0xff]
    %v68 = vld [vmem:[#allocation5 + $0x20] sm:$0xff]
    %v69 = vld [vmem:[#allocation5 + $0x28] sm:$0xff]
    %v70 = vld [vmem:[#allocation5 + $0x30] sm:$0xff]
    %v71 = vld [vmem:[#allocation5 + $0x38] sm:$0xff]
    %v72 = vld [vmem:[#allocation5 + $0x40] sm:$0xff]
    %v73 = vld [vmem:[#allocation5 + $0x48] sm:$0xff]
    %v74 = vld [vmem:[#allocation5 + $0x50] sm:$0xff]
    %v75 = vld [vmem:[#allocation5 + $0x58] sm:$0xff]
    %v76 = vld [vmem:[#allocation5 + $0x60] sm:$0xff]
    %v77 = vld [vmem:[#allocation5 + $0x68] sm:$0xff]
    %v78 = vld [vmem:[#allocation5 + $0x70] sm:$0xff]
    %v79 = vld [vmem:[#allocation5 + $0x78] sm:$0xff]
    %v80 = vld [vmem:[%s2] sm:$0x1]
    %v82 = vlaneseq
    %v83 = vshrl.u32 %v82, 7
    %v84 = vsub.s32 0, %v83
    %v85 = vrot.slane %v80, %v84
    %87 = vmatprep.subr.mxu0 0.0
    %88 = vmatpush1.msra.mxu0 %v79
    %89 = vmatprep.subr.mxu0 0.0
    %90 = vmatpush1.msra.mxu0 %v78
    %91 = vmatprep.subr.mxu0 0.0
    %92 = vmatpush1.msra.mxu0 %v77
    %93 = vmatprep.subr.mxu0 0.0
    %94 = vmatpush1.msra.mxu0 %v76
    %95 = vmatprep.subr.mxu0 0.0
    %96 = vmatpush1.msra.mxu0 %v75
    %97 = vmatprep.subr.mxu0 0.0
    %98 = vmatpush1.msra.mxu0 %v74
    %99 = vmatprep.subr.mxu0 0.0
    %100 = vmatpush1.msra.mxu0 %v73
    %101 = vmatprep.subr.mxu0 0.0
    %102 = vmatpush1.msra.mxu0 %v72
    %103 = vmatprep.subr.mxu0 0.0
    %104 = vmatpush1.msra.mxu0 %v71
    %105 = vmatprep.subr.mxu0 0.0
    %106 = vmatpush1.msra.mxu0 %v70
    %107 = vmatprep.subr.mxu0 0.0
    %108 = vmatpush1.msra.mxu0 %v69
    %109 = vmatprep.subr.mxu0 0.0
    %110 = vmatpush1.msra.mxu0 %v68
    %111 = vmatprep.subr.mxu0 0.0
    %112 = vmatpush1.msra.mxu0 %v67
    %113 = vmatprep.subr.mxu0 0.0
    %114 = vmatpush1.msra.mxu0 %v66
    %115 = vmatprep.subr.mxu0 0.0
    %116 = vmatpush1.msra.mxu0 %v65
    %117 = vmatprep.subr.mxu0 0.0
    %118 = vmatpush1.msra.mxu0 %v64
    %119 = vmatprep.subr.mxu0 0.0
    %120 = vmatpush2.msra.mxu0 0.0
    %121 = vmatprep.subr.mxu0 0.0
    %122 = vmatpush2.msra.mxu0 0.0
    %123 = vmatprep.subr.mxu0 0.0
    %124 = vmatpush2.msra.mxu0 0.0
    %125 = vmatprep.subr.mxu0 0.0
    %126 = vmatpush2.msra.mxu0 0.0
    %127 = vmatprep.subr.mxu0 0.0
    %128 = vmatpush2.msra.mxu0 0.0
    %129 = vmatprep.subr.mxu0 0.0
    %130 = vmatpush2.msra.mxu0 0.0
    %131 = vmatprep.subr.mxu0 0.0
    %132 = vmatpush2.msra.mxu0 0.0
    %133 = vmatprep.subr.mxu0 0.0
    %134 = vmatpush2.msra.mxu0 0.0
    %135 = vmatprep.subr.mxu0 0.0
    %136 = vmatpush2.msra.mxu0 0.0
    %137 = vmatprep.subr.mxu0 0.0
    %138 = vmatpush2.msra.mxu0 0.0
    %139 = vmatprep.subr.mxu0 0.0
    %140 = vmatpush2.msra.mxu0 0.0
    %141 = vmatprep.subr.mxu0 0.0
    %142 = vmatpush2.msra.mxu0 0.0
    %143 = vmatprep.subr.mxu0 0.0
    %144 = vmatpush2.msra.mxu0 0.0
    %145 = vmatprep.subr.mxu0 0.0
    %146 = vmatpush2.msra.mxu0 0.0
    %147 = vmatprep.subr.mxu0 0.0
    %148 = vmatpush2.msra.mxu0 0.0
    %149 = vmatprep.subr.mxu0 0.0
    %150 = vmatpush2.msra.mxu0 0.0
    %151 = vmatprep.mubr.f32.mxu0 0.0
    %152 = vmatmul.mubr.f32.gmra.mxu0 %v62
    %v153 = vpop.f32.mrf.mxu0
    %v154 = vadd.f32 %v85, %v153
    %v155 = vpop.f32.mrf.mxu0
    %156 = vmatprep.mubr.f32.mxu0 0.0
    %157 = vmatmul.mubr.f32.gmra.mxu0 %v63
    %v158 = vpop.f32.mrf.mxu0
    %v159 = vadd.f32 %v85, %v158
    %v160 = vpop.f32.mrf.mxu0
    %161 = vdwg.mxu0
    %v162 = vmax.f32 %v154, 0.0
    %v163 = vmax.f32 %v159, 0.0
    %v164 = vld [vmem:[#allocation7] sm:$0xff]
    %v165 = vld [vmem:[#allocation7 + $0x8] sm:$0xff]
    %v166 = vld [vmem:[#allocation7 + $0x10] sm:$0xff]
    %v167 = vld [vmem:[#allocation7 + $0x18] sm:$0xff]
    %v168 = vld [vmem:[#allocation7 + $0x20] sm:$0xff]
    %v169 = vld [vmem:[#allocation7 + $0x28] sm:$0xff]
    %v170 = vld [vmem:[#allocation7 + $0x30] sm:$0xff]
    %v171 = vld [vmem:[#allocation7 + $0x38] sm:$0xff]
    %v172 = vld [vmem:[#allocation7 + $0x40] sm:$0xff]
    %v173 = vld [vmem:[#allocation7 + $0x48] sm:$0xff]
    %v174 = vld [vmem:[#allocation7 + $0x50] sm:$0xff]
    %v175 = vld [vmem:[#allocation7 + $0x58] sm:$0xff]
    %v176 = vld [vmem:[#allocation7 + $0x60] sm:$0xff]
    %v177 = vld [vmem:[#allocation7 + $0x68] sm:$0xff]
    %v178 = vld [vmem:[#allocation7 + $0x70] sm:$0xff]
    %v179 = vld [vmem:[#allocation7 + $0x78] sm:$0xff]
    %v180 = vld [vmem:[%s4] sm:$0x1]
    %v182 = vlaneseq
    %v183 = vshrl.u32 %v182, 7
    %v184 = vsub.s32 0, %v183
    %v185 = vrot.slane %v180, %v184
    %187 = vmatprep.subr.mxu0 0.0
    %188 = vmatpush1.msra.mxu0 %v179
    %189 = vmatprep.subr.mxu0 0.0
    %190 = vmatpush1.msra.mxu0 %v178
    %191 = vmatprep.subr.mxu0 0.0
    %192 = vmatpush1.msra.mxu0 %v177
    %193 = vmatprep.subr.mxu0 0.0
    %194 = vmatpush1.msra.mxu0 %v176
    %195 = vmatprep.subr.mxu0 0.0
    %196 = vmatpush1.msra.mxu0 %v175
    %197 = vmatprep.subr.mxu0 0.0
    %198 = vmatpush1.msra.mxu0 %v174
    %199 = vmatprep.subr.mxu0 0.0
    %200 = vmatpush1.msra.mxu0 %v173
    %201 = vmatprep.subr.mxu0 0.0
    %202 = vmatpush1.msra.mxu0 %v172
    %203 = vmatprep.subr.mxu0 0.0
    %204 = vmatpush1.msra.mxu0 %v171
    %205 = vmatprep.subr.mxu0 0.0
    %206 = vmatpush1.msra.mxu0 %v170
    %207 = vmatprep.subr.mxu0 0.0
    %208 = vmatpush1.msra.mxu0 %v169
    %209 = vmatprep.subr.mxu0 0.0
    %210 = vmatpush1.msra.mxu0 %v168
    %211 = vmatprep.subr.mxu0 0.0
    %212 = vmatpush1.msra.mxu0 %v167
    %213 = vmatprep.subr.mxu0 0.0
    %214 = vmatpush1.msra.mxu0 %v166
    %215 = vmatprep.subr.mxu0 0.0
    %216 = vmatpush1.msra.mxu0 %v165
    %217 = vmatprep.subr.mxu0 0.0
    %218 = vmatpush1.msra.mxu0 %v164
    %219 = vmatprep.subr.mxu0 0.0
    %220 = vmatpush2.msra.mxu0 0.0
    %221 = vmatprep.subr.mxu0 0.0
    %222 = vmatpush2.msra.mxu0 0.0
    %223 = vmatprep.subr.mxu0 0.0
    %224 = vmatpush2.msra.mxu0 0.0
    %225 = vmatprep.subr.mxu0 0.0
    %226 = vmatpush2.msra.mxu0 0.0
    %227 = vmatprep.subr.mxu0 0.0
    %228 = vmatpush2.msra.mxu0 0.0
    %229 = vmatprep.subr.mxu0 0.0
    %230 = vmatpush2.msra.mxu0 0.0
    %231 = vmatprep.subr.mxu0 0.0
    %232 = vmatpush2.msra.mxu0 0.0
    %233 = vmatprep.subr.mxu0 0.0
    %234 = vmatpush2.msra.mxu0 0.0
    %235 = vmatprep.subr.mxu0 0.0
    %236 = vmatpush2.msra.mxu0 0.0
    %237 = vmatprep.subr.mxu0 0.0
    %238 = vmatpush2.msra.mxu0 0.0
    %239 = vmatprep.subr.mxu0 0.0
    %240 = vmatpush2.msra.mxu0 0.0
    %241 = vmatprep.subr.mxu0 0.0
    %242 = vmatpush2.msra.mxu0 0.0
    %243 = vmatprep.subr.mxu0 0.0
    %244 = vmatpush2.msra.mxu0 0.0
    %245 = vmatprep.subr.mxu0 0.0
    %246 = vmatpush2.msra.mxu0 0.0
    %247 = vmatprep.subr.mxu0 0.0
    %248 = vmatpush2.msra.mxu0 0.0
    %249 = vmatprep.subr.mxu0 0.0
    %250 = vmatpush2.msra.mxu0 0.0
    %251 = vmatprep.mubr.f32.mxu0 0.0
    %252 = vmatmul.mubr.f32.gmra.mxu0 %v162
    %v253 = vpop.f32.mrf.mxu0
    %v254 = vadd.f32 %v185, %v253
    %v255 = vpop.f32.mrf.mxu0
    %256 = vmatprep.mubr.f32.mxu0 0.0
    %257 = vmatmul.mubr.f32.gmra.mxu0 %v163
    %v258 = vpop.f32.mrf.mxu0
    %v259 = vadd.f32 %v185, %v258
    %v260 = vpop.f32.mrf.mxu0
    %261 = vdwg.mxu0
    %262 = vst [vmem:[#allocation8] sm:$0xff] %v254
    %263 = vst [vmem:[#allocation8 + $0x8] sm:$0xff] %v259
    // Predicated region
    $region34: #{tpu_custom_call.1} parent=1 // pred_check
      _
    $region35: #{tpu_custom_call.1} parent=1 // pred_check_branch
      %265 = sbr.rel (0) target = $region37
    $region36: #{tpu_custom_call.1} parent=1 // pred_region
      %s267 = ssub.s32 256, 256
      %268 = vsyncadd [#allocation4], %s267
      %s269 = sshll.u32 [#allocation8], 4
      %s270 = int_to_ptr.vmem [resolvable:$true] %s269
      %275 = dma.vmem_to_hbm [thread:$0]  %s270, 256, %s5, [#allocation4], 128, 128, 8
    $region37: #{tpu_custom_call.1} parent=1 // pred_fallthru
      _
    // Predicated region
    $region38: #{tpu_custom_call.1} parent=1 // pred_check
      _
    $region39: #{tpu_custom_call.1} parent=1 // pred_check_branch
      %277 = sbr.rel (0) target = $region41
    $region40: #{tpu_custom_call.1} parent=1 // pred_region
      %278 = dma.done [#allocation4], 256
    $region41: #{tpu_custom_call.1} parent=1 // pred_fallthru
      _
    %279 = vsyncpa [#allocation3], 1
    %280 = vsyncpa [#allocation6], 1
    %281 = vsyncpa [#allocation4], 1

</llo_original>
